<compile_context>
chip_gen: v7x
topology: tpu7x:2x2x1
jax: 0.10.0
libtpu: 0.0.40
codegen_flags: <defaults>
</compile_context>

<pallas_src>
import jax
import jax.numpy as jnp
from jax.experimental import pallas as pl
from jax.experimental.pallas import tpu as pltpu

PACK = 8  # rows packed per lane-dense row (= sublane count)


def net16_kernel(x_ref, w1_ref, b1_ref, w2_ref, b2_ref, o_ref):
    # x_ref : (bm, K)   streaming batch tile (f32 or bf16)
    # w1_ref: (K, H)    resident weight, same dtype as x
    # b1_ref: (1, H)    f32
    # w2_ref: (H, N)    resident weight, f32
    # b2_ref: (1, N)    f32
    # o_ref : (bm, N)   out dtype
    h = jnp.dot(x_ref[...], w1_ref[...], preferred_element_type=jnp.float32)
    h = jnp.maximum(h + b1_ref[...], 0.0)          # bias + ReLU in f32 on the VPU
    y = jnp.dot(h, w2_ref[...], preferred_element_type=jnp.float32)
    o_ref[...] = (y + b2_ref[...]).astype(o_ref.dtype)


def _round_up(n, m):
    return -(-n // m) * m


def _padded_vmem_bytes(rows, cols, dtype):
    # Physical VMEM footprint of a (rows, cols) tile after (8, 128) tiling.
    return _round_up(max(rows, 1), 8) * _round_up(cols, 128) * jnp.dtype(dtype).itemsize


def _num_tensorcores():
    """Best-effort TensorCores-per-chip (2 on v7x, 1 on v5e/v6e); 1 on failure."""
    try:
        info = pltpu.get_tpu_info()
    except Exception:
        return 1
    for name in ("num_cores", "num_tensorcores", "tensorcores_per_chip",
                 "cores_per_chip", "core_count"):
        v = getattr(info, name, None)
        if v is None:
            continue
        try:
            v = int(v)
        except (TypeError, ValueError):
            continue
        if v > 0:
            return min(v, 2)
    return 1


def net16_forward(x, w1, b1, w2, b2, *, bm_rows=8192, out_dtype=None,
                  pack=None, vmem_limit_bytes=32 * 1024 * 1024):
    """Forward pass of Net16.

    x : (B, input_dim)   f32 or bf16 -- streamed as-is, never cast in the wrapper.
    w1: (16, input_dim), b1: (16,), w2: (output_dim, 16), b2: (output_dim,)
        (PyTorch nn.Linear parameter convention)
    Returns (B, output_dim) in `out_dtype` (default: x.dtype).

    `bm_rows` is the batch tile in rows of the kernel's streaming layout
    (packed rows = 8 original rows when the lane-dense repack is active).
    """
    B, input_dim = x.shape
    hidden = w1.shape[0]          # 16
    output_dim = w2.shape[0]
    out_dtype = x.dtype if out_dtype is None else out_dtype

    if pack is None:
        # Block-diagonal W1 is (8I, 128); only worth it while that stays tiny.
        pack = input_dim <= 64

    # ---- layout glue (weights are tiny; x is only relabelled) ----------------
    if pack:
        B8 = _round_up(B, PACK)
        if B8 != B:               # <=7-row tail pad; no-op for 8-aligned batches
            x = jnp.pad(x, ((0, B8 - B), (0, 0)))
        rows = B8 // PACK
        xk = x.reshape(rows, PACK * input_dim)                 # pure relabel
        w1k = jax.scipy.linalg.block_diag(*([w1.T] * PACK)).astype(x.dtype)      # (8I, 128)
        w2k = jax.scipy.linalg.block_diag(*([w2.T] * PACK)).astype(jnp.float32)  # (128, 8O)
        b1k = jnp.tile(b1.astype(jnp.float32), PACK).reshape(1, PACK * hidden)
        b2k = jnp.tile(b2.astype(jnp.float32), PACK).reshape(1, PACK * output_dim)
    else:
        rows = B
        xk = x
        w1k = jnp.asarray(w1.T, x.dtype)                       # (I, 16)
        w2k = jnp.asarray(w2.T, jnp.float32)                   # (16, O)
        b1k = jnp.asarray(b1, jnp.float32).reshape(1, hidden)
        b2k = jnp.asarray(b2, jnp.float32).reshape(1, output_dim)

    in_cols = xk.shape[1]
    hid_cols = w1k.shape[1]
    out_cols = w2k.shape[1]

    # ---- generation-aware tile sizing ----------------------------------------
    try:  # clamp scoped VMEM request to half the physical VMEM (64 MiB on v7x)
        phys_vmem = int(pltpu.get_tpu_info().vmem_capacity_bytes)
        vmem_limit_bytes = min(vmem_limit_bytes, phys_vmem // 2)
    except Exception:
        pass

    resident = 2 * (_padded_vmem_bytes(w1k.shape[0], hid_cols, w1k.dtype)
                    + _padded_vmem_bytes(1, hid_cols, jnp.float32)
                    + _padded_vmem_bytes(hid_cols, out_cols, jnp.float32)
                    + _padded_vmem_bytes(1, out_cols, jnp.float32))
    # double-buffered x tile + out tile, with lane padding to 128
    stream_row_bytes = 2 * (_round_up(in_cols, 128) * jnp.dtype(xk.dtype).itemsize
                            + _round_up(out_cols, 128) * jnp.dtype(out_dtype).itemsize)
    budget = max(vmem_limit_bytes - resident - (1 << 20), vmem_limit_bytes // 2)
    bm = min(int(bm_rows), max(8, (budget // stream_row_bytes) // 8 * 8))
    bm = min(bm, _round_up(rows, 8))
    bm = max(8, (bm // 8) * 8)

    # Keep >=2 grid steps per TensorCore on multi-TC chips (v7x) so each core's
    # prefetch/writeback pipeline stays alive; never force a split on v5e/v6e.
    n_tc = _num_tensorcores()
    if n_tc > 1:
        min_steps = 2 * n_tc
        bm = min(bm, max(8, _round_up(pl.cdiv(rows, min_steps), 8)))

    grid_m = pl.cdiv(rows, bm)

    cost = pl.CostEstimate(
        flops=2 * rows * (in_cols * hid_cols + hid_cols * out_cols),
        transcendentals=0,
        bytes_accessed=(rows * in_cols * jnp.dtype(xk.dtype).itemsize       # read x
                        + rows * out_cols * jnp.dtype(out_dtype).itemsize   # write y
                        + w1k.size * jnp.dtype(w1k.dtype).itemsize
                        + w2k.size * 4 + (b1k.size + b2k.size) * 4),
    )

    out = pl.pallas_call(
        net16_kernel,
        out_shape=jax.ShapeDtypeStruct((rows, out_cols), out_dtype),
        grid_spec=pltpu.PrefetchScalarGridSpec(
            num_scalar_prefetch=0,
            grid=(grid_m,),
            in_specs=[
                pl.BlockSpec((bm, in_cols), lambda i: (i, 0)),             # x stream
                pl.BlockSpec((w1k.shape[0], hid_cols), lambda i: (0, 0)),  # w1 resident
                pl.BlockSpec((1, hid_cols), lambda i: (0, 0)),             # b1 resident
                pl.BlockSpec((hid_cols, out_cols), lambda i: (0, 0)),      # w2 resident
                pl.BlockSpec((1, out_cols), lambda i: (0, 0)),             # b2 resident
            ],
            out_specs=pl.BlockSpec((bm, out_cols), lambda i: (i, 0)),
        ),
        compiler_params=pltpu.CompilerParams(
            dimension_semantics=("parallel",),
            vmem_limit_bytes=int(vmem_limit_bytes)),
        cost_estimate=cost,
    )(xk, w1k, b1k, w2k, b2k)

    if pack:
        out = out.reshape(rows * PACK, output_dim)   # pure relabel back to (B8, O)
        if rows * PACK != B:
            out = out[:B]
    return out


def init_params(key, input_dim, output_dim, hidden=16):
    """Deterministic init mimicking PyTorch nn.Linear default: U(-1/sqrt(fan_in), +)."""
    k1, k2, k3, k4 = jax.random.split(key, 4)
    bound1 = 1.0 / (input_dim ** 0.5)
    bound2 = 1.0 / (hidden ** 0.5)
    w1 = jax.random.uniform(k1, (hidden, input_dim), jnp.float32, -bound1, bound1)
    b1 = jax.random.uniform(k2, (hidden,), jnp.float32, -bound1, bound1)
    w2 = jax.random.uniform(k3, (output_dim, hidden), jnp.float32, -bound2, bound2)
    b2 = jax.random.uniform(k4, (output_dim,), jnp.float32, -bound2, bound2)
    return w1, b1, w2, b2


if __name__ == "__main__":
    key = jax.random.PRNGKey(0)
    kx, kp, kx2 = jax.random.split(key, 3)

    # Small shapes consistent with the module (hidden is fixed at 16 by Net16).
    B, input_dim, output_dim = 64, 16, 4
    x = jax.random.normal(kx, (B, input_dim), jnp.float32)
    w1, b1, w2, b2 = init_params(kp, input_dim, output_dim)

    # f32 path, exact-ish check.
    out = jax.block_until_ready(net16_forward(x, w1, b1, w2, b2))
    ref = jnp.maximum(x @ w1.T + b1, 0.0) @ w2.T + b2
    assert out.shape == (B, output_dim)
    assert jnp.allclose(out, ref, atol=1e-4, rtol=1e-4)

    # Non-8-aligned batch: exercises the <=7-row tail pad, the partial last
    # row-block (Pallas-masked writeback), and (on v7x) the multi-step grid.
    B2 = 1003
    x2 = jax.random.normal(kx2, (B2, input_dim), jnp.float32)
    out2 = jax.block_until_ready(net16_forward(x2, w1, b1, w2, b2))
    ref2 = jnp.maximum(x2 @ w1.T + b1, 0.0) @ w2.T + b2
    assert out2.shape == (B2, output_dim)
    assert jnp.allclose(out2, ref2, atol=1e-4, rtol=1e-4)

    # Caller-provided bf16 input (no wrapper cast): x/W1 stream in bf16, hidden
    # activation and W2 stay f32 for the second matmul, output comes back bf16.
    x3 = x2.astype(jnp.bfloat16)
    out3 = jax.block_until_ready(net16_forward(x3, w1, b1, w2, b2))
    assert out3.shape == (B2, output_dim)
    assert out3.dtype == jnp.bfloat16
    assert jnp.allclose(out3.astype(jnp.float32), ref2, atol=5e-2, rtol=5e-2)

    print("KERNEL_OK")
</pallas_src>

<mosaic_0001>
module attributes {stable_mosaic.version = 11 : i64} {
  func.func @net16_kernel(%arg0: i32, %arg1: memref<8x128xf32, #tpu.memory_space<vmem>>, %arg2: memref<128x128xf32, #tpu.memory_space<vmem>>, %arg3: memref<1x128xf32, #tpu.memory_space<vmem>>, %arg4: memref<128x32xf32, #tpu.memory_space<vmem>>, %arg5: memref<1x32xf32, #tpu.memory_space<vmem>>, %arg6: memref<8x32xf32, #tpu.memory_space<vmem>>) attributes {dimension_semantics = [#tpu.dimension_semantics<parallel>], iteration_bounds = array<i64: 1>, scalar_prefetch = 0 : i64, scratch_operands = 0 : i64, tpu.core_type = #tpu.core_type<tc>, window_params = [{transform_indices = @transform_0, window_bounds = array<i64: 8, 128>}, {pipeline_mode = #tpu.pipeline_mode<synchronous>, transform_indices = @transform_1, window_bounds = array<i64: 128, 128>}, {pipeline_mode = #tpu.pipeline_mode<synchronous>, transform_indices = @transform_2, window_bounds = array<i64: 1, 128>}, {pipeline_mode = #tpu.pipeline_mode<synchronous>, transform_indices = @transform_3, window_bounds = array<i64: 128, 32>}, {pipeline_mode = #tpu.pipeline_mode<synchronous>, transform_indices = @transform_4, window_bounds = array<i64: 1, 32>}, {transform_indices = @transform_5, window_bounds = array<i64: 8, 32>}]} {
    %c0 = arith.constant 0 : index
    %c0_0 = arith.constant 0 : index
    %0 = vector.load %arg1[%c0, %c0_0] : memref<8x128xf32, #tpu.memory_space<vmem>>, vector<8x128xf32>
    %c0_1 = arith.constant 0 : index
    %c0_2 = arith.constant 0 : index
    %1 = vector.load %arg2[%c0_1, %c0_2] : memref<128x128xf32, #tpu.memory_space<vmem>>, vector<128x128xf32>
    %cst = arith.constant dense<0.000000e+00> : vector<8x128xf32>
    %2 = tpu.matmul %0, %1, %cst {dimension_numbers = #tpu.dot_dimension_numbers<[1], [0], [0], [1], [0, 0, 1, 1], [], []>} : vector<8x128xf32>, vector<128x128xf32>, vector<8x128xf32> -> vector<8x128xf32>
    %c0_3 = arith.constant 0 : index
    %c0_4 = arith.constant 0 : index
    %3 = vector.load %arg3[%c0_3, %c0_4] : memref<1x128xf32, #tpu.memory_space<vmem>>, vector<1x128xf32>
    %4 = vector.broadcast %3 : vector<1x128xf32> to vector<8x128xf32>
    %5 = arith.addf %2, %4 : vector<8x128xf32>
    %cst_5 = arith.constant 0.000000e+00 : f32
    %6 = vector.broadcast %cst_5 : f32 to vector<8x128xf32>
    %7 = arith.maximumf %5, %6 : vector<8x128xf32>
    %c0_6 = arith.constant 0 : index
    %c0_7 = arith.constant 0 : index
    %8 = vector.load %arg4[%c0_6, %c0_7] : memref<128x32xf32, #tpu.memory_space<vmem>>, vector<128x32xf32>
    %cst_8 = arith.constant dense<0.000000e+00> : vector<8x32xf32>
    %9 = tpu.matmul %7, %8, %cst_8 {dimension_numbers = #tpu.dot_dimension_numbers<[1], [0], [0], [1], [0, 0, 1, 1], [], []>} : vector<8x128xf32>, vector<128x32xf32>, vector<8x32xf32> -> vector<8x32xf32>
    %c0_9 = arith.constant 0 : index
    %c0_10 = arith.constant 0 : index
    %10 = vector.load %arg5[%c0_9, %c0_10] : memref<1x32xf32, #tpu.memory_space<vmem>>, vector<1x32xf32>
    %11 = vector.broadcast %10 : vector<1x32xf32> to vector<8x32xf32>
    %12 = arith.addf %9, %11 : vector<8x32xf32>
    %c0_11 = arith.constant 0 : index
    %c0_12 = arith.constant 0 : index
    %13 = vector.load %arg6[%c0_11, %c0_12] : memref<8x32xf32, #tpu.memory_space<vmem>>, vector<8x32xf32>
    tpu.vector_store %arg6[%c0_11, %c0_12], %12 {strides = array<i32>} : memref<8x32xf32, #tpu.memory_space<vmem>>, vector<8x32xf32>,
    return
  }
  func.func @transform_0(%arg0: i32) -> (i32, i32) {
    %c0_i32 = arith.constant 0 : i32
    %c0_i32_0 = arith.constant 0 : i32
    return %arg0, %c0_i32 : i32, i32
  }
  func.func @transform_1(%arg0: i32) -> (i32, i32) {
    %c0_i32 = arith.constant 0 : i32
    %c0_i32_0 = arith.constant 0 : i32
    %c0_i32_1 = arith.constant 0 : i32
    return %c0_i32, %c0_i32_0 : i32, i32
  }
  func.func @transform_2(%arg0: i32) -> (i32, i32) {
    %c0_i32 = arith.constant 0 : i32
    %c0_i32_0 = arith.constant 0 : i32
    %c0_i32_1 = arith.constant 0 : i32
    return %c0_i32, %c0_i32_0 : i32, i32
  }
  func.func @transform_3(%arg0: i32) -> (i32, i32) {
    %c0_i32 = arith.constant 0 : i32
    %c0_i32_0 = arith.constant 0 : i32
    %c0_i32_1 = arith.constant 0 : i32
    return %c0_i32, %c0_i32_0 : i32, i32
  }
  func.func @transform_4(%arg0: i32) -> (i32, i32) {
    %c0_i32 = arith.constant 0 : i32
    %c0_i32_0 = arith.constant 0 : i32
    %c0_i32_1 = arith.constant 0 : i32
    return %c0_i32, %c0_i32_0 : i32, i32
  }
  func.func @transform_5(%arg0: i32) -> (i32, i32) {
    %c0_i32 = arith.constant 0 : i32
    %c0_i32_0 = arith.constant 0 : i32
    return %arg0, %c0_i32 : i32, i32
  }
}

</mosaic_0001>

<llo_original>
// kernel: tpu_custom_call.1
$region0: #{tpu_custom_call.1}
  #allocation0 [shape = 'u32[]', space=smem, size = 0x4, offset = 0x4, fixed_abs, tag = 'smem constant byte address 0x4 - core index']
  #allocation1 [shape = 'u32[144,128]{1,0:T(1,128)}', space=vmem, size = 0x12000, scoped, tag = 'internal scratch']
  %s0 = inlined_call_operand.vmem [shape: f32[8,128], index: 0, kind: input, shape index: {}]
  %s1 = inlined_call_operand.vmem [shape: f32[128,128], index: 1, kind: input, shape index: {}]
  %s2 = inlined_call_operand.vmem [shape: f32[1,128], index: 2, kind: input, shape index: {}]
  %s3 = inlined_call_operand.vmem [shape: f32[128,32], index: 3, kind: input, shape index: {}]
  %s4 = inlined_call_operand.vmem [shape: f32[1,32], index: 4, kind: input, shape index: {}]
  %s5 = inlined_call_operand.hbm [shape: f32[8,32], index: 5, kind: output, shape index: {}]
  %s6 = sld [smem:[#allocation0]]
  $region30: #{tpu_custom_call.1} parent=0
    _
  %s8 = ssub.s32 1, %s6
  %s9 = scalar_select 0, %s8, %s6
  $region1: #{tpu_custom_call.1} parent=0
    #allocation2 [shape = 'u8[4096]{0}', space=vmem, size = 0x1000, scoped, tag = 'output window, operand 0, single buffered']
    #allocation3 [shape = 's32[1]{0}', space=sflag, size = 0x4, scoped, tag = 'scoped memory for tpu_custom_call.1']
    %10 = vsyncpa [#allocation3], 0
    // Predicated region
    $region2: #{tpu_custom_call.1} parent=1 // pred_check
      _
    $region3: #{tpu_custom_call.1} parent=1 // pred_check_branch
      %12 = sbr.rel (0) target = $region5
    $region4: #{tpu_custom_call.1} parent=1 // pred_region
      _
    $region5: #{tpu_custom_call.1} parent=1 // pred_fallthru
      _
    // Predicated region
    $region6: #{tpu_custom_call.1} parent=1 // pred_check
      _
    $region7: #{tpu_custom_call.1} parent=1 // pred_check_branch
      %14 = sbr.rel (0) target = $region9
    $region8: #{tpu_custom_call.1} parent=1 // pred_region
      _
    $region9: #{tpu_custom_call.1} parent=1 // pred_fallthru
      _
    // Predicated region
    $region10: #{tpu_custom_call.1} parent=1 // pred_check
      _
    $region11: #{tpu_custom_call.1} parent=1 // pred_check_branch
      %16 = sbr.rel (0) target = $region13
    $region12: #{tpu_custom_call.1} parent=1 // pred_region
      _
    $region13: #{tpu_custom_call.1} parent=1 // pred_fallthru
      _
    // Predicated region
    $region14: #{tpu_custom_call.1} parent=1 // pred_check
      _
    $region15: #{tpu_custom_call.1} parent=1 // pred_check_branch
      %18 = sbr.rel (0) target = $region17
    $region16: #{tpu_custom_call.1} parent=1 // pred_region
      _
    $region17: #{tpu_custom_call.1} parent=1 // pred_fallthru
      _
    // Predicated region
    $region18: #{tpu_custom_call.1} parent=1 // pred_check
      _
    $region19: #{tpu_custom_call.1} parent=1 // pred_check_branch
      %20 = sbr.rel (0) target = $region21
    $region20: #{tpu_custom_call.1} parent=1 // pred_region
      _
    $region21: #{tpu_custom_call.1} parent=1 // pred_fallthru
      _
    %v21 = vld [vmem:[%s0] sm:$0xff]
    %v22 = vld [vmem:[%s1] sm:$0xff]
    %v23 = vld [vmem:[%s1 + $0x8] sm:$0xff]
    %v24 = vld [vmem:[%s1 + $0x10] sm:$0xff]
    %v25 = vld [vmem:[%s1 + $0x18] sm:$0xff]
    %v26 = vld [vmem:[%s1 + $0x20] sm:$0xff]
    %v27 = vld [vmem:[%s1 + $0x28] sm:$0xff]
    %v28 = vld [vmem:[%s1 + $0x30] sm:$0xff]
    %v29 = vld [vmem:[%s1 + $0x38] sm:$0xff]
    %v30 = vld [vmem:[%s1 + $0x40] sm:$0xff]
    %v31 = vld [vmem:[%s1 + $0x48] sm:$0xff]
    %v32 = vld [vmem:[%s1 + $0x50] sm:$0xff]
    %v33 = vld [vmem:[%s1 + $0x58] sm:$0xff]
    %v34 = vld [vmem:[%s1 + $0x60] sm:$0xff]
    %v35 = vld [vmem:[%s1 + $0x68] sm:$0xff]
    %v36 = vld [vmem:[%s1 + $0x70] sm:$0xff]
    %v37 = vld [vmem:[%s1 + $0x78] sm:$0xff]
    %v38 = vld [vmem:[%s2] sm:$0x1]
    %v40 = vlaneseq
    %v41 = vshrl.u32 %v40, 7
    %v42 = vsub.s32 0, %v41
    %v43 = vrot.slane %v38, %v42
    %45 = vmatprep.subr.mxu0 0.0
    %46 = vmatpush1.msra.mxu0 %v22
    %47 = vmatprep.subr.mxu0 0.0
    %48 = vmatpush1.msra.mxu0 %v23
    %49 = vmatprep.subr.mxu0 0.0
    %50 = vmatpush1.msra.mxu0 %v24
    %51 = vmatprep.subr.mxu0 0.0
    %52 = vmatpush1.msra.mxu0 %v25
    %53 = vmatprep.subr.mxu0 0.0
    %54 = vmatpush1.msra.mxu0 %v26
    %55 = vmatprep.subr.mxu0 0.0
    %56 = vmatpush1.msra.mxu0 %v27
    %57 = vmatprep.subr.mxu0 0.0
    %58 = vmatpush1.msra.mxu0 %v28
    %59 = vmatprep.subr.mxu0 0.0
    %60 = vmatpush1.msra.mxu0 %v29
    %61 = vmatprep.subr.mxu0 0.0
    %62 = vmatpush1.msra.mxu0 %v30
    %63 = vmatprep.subr.mxu0 0.0
    %64 = vmatpush1.msra.mxu0 %v31
    %65 = vmatprep.subr.mxu0 0.0
    %66 = vmatpush1.msra.mxu0 %v32
    %67 = vmatprep.subr.mxu0 0.0
    %68 = vmatpush1.msra.mxu0 %v33
    %69 = vmatprep.subr.mxu0 0.0
    %70 = vmatpush1.msra.mxu0 %v34
    %71 = vmatprep.subr.mxu0 0.0
    %72 = vmatpush1.msra.mxu0 %v35
    %73 = vmatprep.subr.mxu0 0.0
    %74 = vmatpush1.msra.mxu0 %v36
    %75 = vmatprep.subr.mxu0 0.0
    %76 = vmatpush1.msra.mxu0 %v37
    %77 = vmatprep.subr.mxu0 0.0
    %78 = vmatpush1.msra.mxu0 0.0
    %79 = vmatprep.subr.mxu0 0.0
    %80 = vmatpush1.msra.mxu0 0.0
    %81 = vmatprep.subr.mxu0 0.0
    %82 = vmatpush1.msra.mxu0 0.0
    %83 = vmatprep.subr.mxu0 0.0
    %84 = vmatpush1.msra.mxu0 0.0
    %85 = vmatprep.subr.mxu0 0.0
    %86 = vmatpush1.msra.mxu0 0.0
    %87 = vmatprep.subr.mxu0 0.0
    %88 = vmatpush1.msra.mxu0 0.0
    %89 = vmatprep.subr.mxu0 0.0
    %90 = vmatpush1.msra.mxu0 0.0
    %91 = vmatprep.subr.mxu0 0.0
    %92 = vmatpush1.msra.mxu0 0.0
    %93 = vmatprep.subr.mxu0 0.0
    %94 = vmatpush1.msra.mxu0 0.0
    %95 = vmatprep.subr.mxu0 0.0
    %96 = vmatpush1.msra.mxu0 0.0
    %97 = vmatprep.subr.mxu0 0.0
    %98 = vmatpush1.msra.mxu0 0.0
    %99 = vmatprep.subr.mxu0 0.0
    %100 = vmatpush1.msra.mxu0 0.0
    %101 = vmatprep.subr.mxu0 0.0
    %102 = vmatpush1.msra.mxu0 0.0
    %103 = vmatprep.subr.mxu0 0.0
    %104 = vmatpush1.msra.mxu0 0.0
    %105 = vmatprep.subr.mxu0 0.0
    %106 = vmatpush1.msra.mxu0 0.0
    %107 = vmatprep.subr.mxu0 0.0
    %108 = vmatpush1.msra.mxu0 0.0
    %109 = vmatprep.mubr.f32.mxu0 0.0
    %110 = vmatmul.mubr.f32.gmra.mrb[0].mxu0 %v21
    %v111 = vpop.f32.mrb[0].mxu0
    %v112 = vadd.f32 %v43, %v111
    %v113 = vpop.f32.mrb[0].mxu0
    %114 = vdwg.mxu0
    %v115 = vmax.f32 %v112, 0.0
    %v116 = vld [vmem:[%s3] sm:$0xff]
    %v117 = vld [vmem:[%s3 + $0x8] sm:$0xff]
    %v118 = vld [vmem:[%s3 + $0x10] sm:$0xff]
    %v119 = vld [vmem:[%s3 + $0x18] sm:$0xff]
    %v120 = vld [vmem:[%s3 + $0x20] sm:$0xff]
    %v121 = vld [vmem:[%s3 + $0x28] sm:$0xff]
    %v122 = vld [vmem:[%s3 + $0x30] sm:$0xff]
    %v123 = vld [vmem:[%s3 + $0x38] sm:$0xff]
    %v124 = vld [vmem:[%s3 + $0x40] sm:$0xff]
    %v125 = vld [vmem:[%s3 + $0x48] sm:$0xff]
    %v126 = vld [vmem:[%s3 + $0x50] sm:$0xff]
    %v127 = vld [vmem:[%s3 + $0x58] sm:$0xff]
    %v128 = vld [vmem:[%s3 + $0x60] sm:$0xff]
    %v129 = vld [vmem:[%s3 + $0x68] sm:$0xff]
    %v130 = vld [vmem:[%s3 + $0x70] sm:$0xff]
    %v131 = vld [vmem:[%s3 + $0x78] sm:$0xff]
    %v132 = vld [vmem:[%s4] sm:$0x1]
    %v134 = vlaneseq
    %v135 = vshrl.u32 %v134, 7
    %v136 = vsub.s32 0, %v135
    %v137 = vrot.slane %v132, %v136
    %139 = vmatprep.subr.mxu0 0.0
    %140 = vmatpush1.msra.mxu0 %v116
    %141 = vmatprep.subr.mxu0 0.0
    %142 = vmatpush1.msra.mxu0 %v117
    %143 = vmatprep.subr.mxu0 0.0
    %144 = vmatpush1.msra.mxu0 %v118
    %145 = vmatprep.subr.mxu0 0.0
    %146 = vmatpush1.msra.mxu0 %v119
    %147 = vmatprep.subr.mxu0 0.0
    %148 = vmatpush1.msra.mxu0 %v120
    %149 = vmatprep.subr.mxu0 0.0
    %150 = vmatpush1.msra.mxu0 %v121
    %151 = vmatprep.subr.mxu0 0.0
    %152 = vmatpush1.msra.mxu0 %v122
    %153 = vmatprep.subr.mxu0 0.0
    %154 = vmatpush1.msra.mxu0 %v123
    %155 = vmatprep.subr.mxu0 0.0
    %156 = vmatpush1.msra.mxu0 %v124
    %157 = vmatprep.subr.mxu0 0.0
    %158 = vmatpush1.msra.mxu0 %v125
    %159 = vmatprep.subr.mxu0 0.0
    %160 = vmatpush1.msra.mxu0 %v126
    %161 = vmatprep.subr.mxu0 0.0
    %162 = vmatpush1.msra.mxu0 %v127
    %163 = vmatprep.subr.mxu0 0.0
    %164 = vmatpush1.msra.mxu0 %v128
    %165 = vmatprep.subr.mxu0 0.0
    %166 = vmatpush1.msra.mxu0 %v129
    %167 = vmatprep.subr.mxu0 0.0
    %168 = vmatpush1.msra.mxu0 %v130
    %169 = vmatprep.subr.mxu0 0.0
    %170 = vmatpush1.msra.mxu0 %v131
    %171 = vmatprep.subr.mxu0 0.0
    %172 = vmatpush1.msra.mxu0 0.0
    %173 = vmatprep.subr.mxu0 0.0
    %174 = vmatpush1.msra.mxu0 0.0
    %175 = vmatprep.subr.mxu0 0.0
    %176 = vmatpush1.msra.mxu0 0.0
    %177 = vmatprep.subr.mxu0 0.0
    %178 = vmatpush1.msra.mxu0 0.0
    %179 = vmatprep.subr.mxu0 0.0
    %180 = vmatpush1.msra.mxu0 0.0
    %181 = vmatprep.subr.mxu0 0.0
    %182 = vmatpush1.msra.mxu0 0.0
    %183 = vmatprep.subr.mxu0 0.0
    %184 = vmatpush1.msra.mxu0 0.0
    %185 = vmatprep.subr.mxu0 0.0
    %186 = vmatpush1.msra.mxu0 0.0
    %187 = vmatprep.subr.mxu0 0.0
    %188 = vmatpush1.msra.mxu0 0.0
    %189 = vmatprep.subr.mxu0 0.0
    %190 = vmatpush1.msra.mxu0 0.0
    %191 = vmatprep.subr.mxu0 0.0
    %192 = vmatpush1.msra.mxu0 0.0
    %193 = vmatprep.subr.mxu0 0.0
    %194 = vmatpush1.msra.mxu0 0.0
    %195 = vmatprep.subr.mxu0 0.0
    %196 = vmatpush1.msra.mxu0 0.0
    %197 = vmatprep.subr.mxu0 0.0
    %198 = vmatpush1.msra.mxu0 0.0
    %199 = vmatprep.subr.mxu0 0.0
    %200 = vmatpush1.msra.mxu0 0.0
    %201 = vmatprep.subr.mxu0 0.0
    %202 = vmatpush1.msra.mxu0 0.0
    %203 = vmatprep.mubr.f32.mxu0 0.0
    %204 = vmatmul.mubr.f32.gmra.mrb[0].mxu0 %v115
    %v205 = vpop.f32.mrb[0].mxu0
    %v206 = vadd.f32 %v137, %v205
    %v207 = vpop.f32.mrb[0].mxu0
    %208 = vdwg.mxu0
    %vm209 = vcmask 261120
    %210 = vst.msk [vmem:[#allocation2] sm:$0xff] %vm209, %v206
    // Predicated region
    $region22: #{tpu_custom_call.1} parent=1 // pred_check
      _
    $region23: #{tpu_custom_call.1} parent=1 // pred_check_branch
      %212 = sbr.rel (0) target = $region25
    $region24: #{tpu_custom_call.1} parent=1 // pred_region
      %s214 = ssub.s32 128, 128
      %215 = vsyncadd [#allocation3], %s214
      %s217 = sshll.u32 [#allocation2], 4
      %s218 = int_to_ptr.vmem [resolvable:$true] %s217
      %220 = dma.vmem_to_hbm [thread:$0]  %s218, 128, %s5, [#allocation3]
    $region25: #{tpu_custom_call.1} parent=1 // pred_fallthru
      _
    // Predicated region
    $region26: #{tpu_custom_call.1} parent=1 // pred_check
      _
    $region27: #{tpu_custom_call.1} parent=1 // pred_check_branch
      %222 = sbr.rel (0) target = $region29
    $region28: #{tpu_custom_call.1} parent=1 // pred_region
      %223 = dma.done [#allocation3], 128
    $region29: #{tpu_custom_call.1} parent=1 // pred_fallthru
      _
    %224 = vsyncpa [#allocation3], 1

</llo_original>
